<compile_context>
chip_gen: v7x
topology: tpu7x:2x2x1
jax: 0.10.0
libtpu: 0.0.40
codegen_flags: <defaults>
</compile_context>

<pallas_src>
import functools

import jax
import jax.numpy as jnp
from jax.experimental import pallas as pl
from jax.experimental.pallas import tpu as pltpu

_LN_EPS = 1e-5
_LANE = 128
_SUBLANE = 8


def _round_up(n, m):
    return (n + m - 1) // m * m


def _layer_norm(h, gamma, beta, true_f):
    """LayerNorm over the last axis of a lane-padded block.

    `h` is zero on pad lanes, so one-pass sums over all lanes divided by the
    true feature count give the exact mean / E[x^2]; gamma/beta are zero on
    pad lanes so the output stays zero there as well.
    """
    inv_f = 1.0 / float(true_f)
    mu = jnp.sum(h, axis=-1, keepdims=True) * inv_f
    msq = jnp.sum(h * h, axis=-1, keepdims=True) * inv_f
    var = msq - mu * mu
    inv = jax.lax.rsqrt(var + _LN_EPS)
    scale = gamma * inv                 # (TB, Fp)
    shift = beta - mu * scale
    return h * scale + shift


def expert_kernel(x_ref, w1_ref, w2_ref, w3_ref, w4_ref, vec_ref, o_ref,
                  *, f1, f2):
    # vec_ref rows: 0=b1 1=g1 2=be1 3=b2 4=g2 5=be2 6=b3 7=g3 8=be3 9=b4
    x = x_ref[...]                                            # bf16 (TB, Din_p)

    # fc1 -> relu -> layer_norm1
    h = jnp.dot(x, w1_ref[...], preferred_element_type=jnp.float32)
    h = jnp.maximum(h + vec_ref[0:1, :], 0.0)
    h = _layer_norm(h, vec_ref[1:2, :], vec_ref[2:3, :], f1)

    # fc2 -> relu -> layer_norm2
    h = jnp.dot(h.astype(jnp.bfloat16), w2_ref[...],
                preferred_element_type=jnp.float32)
    h = jnp.maximum(h + vec_ref[3:4, :], 0.0)
    h = _layer_norm(h, vec_ref[4:5, :], vec_ref[5:6, :], f2)

    # fc3 -> relu -> layer_norm3
    h = jnp.dot(h.astype(jnp.bfloat16), w3_ref[...],
                preferred_element_type=jnp.float32)
    h = jnp.maximum(h + vec_ref[6:7, :], 0.0)
    h = _layer_norm(h, vec_ref[7:8, :], vec_ref[8:9, :], f1)

    # fc4 (lane-dense padded output; true columns sliced in the wrapper)
    o_ref[...] = jnp.dot(h.astype(jnp.bfloat16), w4_ref[...],
                         preferred_element_type=jnp.float32) + vec_ref[9:10, :]


def _fixup_input(x, input_dim):
    """Mirror the PyTorch dim-handling glue (flatten / pool / pad)."""
    x = x.astype(jnp.float32)
    if x.ndim > 2:
        x = x.reshape(x.shape[0], -1)
    f = x.shape[-1]
    if f == input_dim:
        return x
    if f > input_dim:
        if f % input_dim == 0:
            # adaptive_avg_pool1d with divisible sizes == grouped mean
            return x.reshape(x.shape[0], input_dim, f // input_dim).mean(axis=-1)
        # TODO(synk): non-divisible adaptive_avg_pool1d not implemented
        raise NotImplementedError("adaptive_avg_pool1d with non-divisible sizes")
    return jnp.pad(x, ((0, 0), (0, input_dim - f)))


@functools.partial(jax.jit, static_argnames=("input_dim", "hidden_dim", "out_dim"))
def expert_forward(x, kparams, *, input_dim, hidden_dim, out_dim):
    x = _fixup_input(x, input_dim)                       # (B, input_dim) f32
    B = x.shape[0]
    din_p = kparams["w1"].shape[0]
    fp = kparams["w1"].shape[1]

    # Lane-pad input features; cast to bf16 (the kernel feeds the MXU in bf16
    # anyway, and this halves the x DMA).
    if din_p != input_dim:
        x = jnp.pad(x, ((0, 0), (0, din_p - input_dim)))
    x = x.astype(jnp.bfloat16)

    # Batch tiling: large sublane-dense row blocks, zero-padded rows.
    tb = 256 if B >= 256 else _round_up(B, _SUBLANE)
    bp = _round_up(B, tb)
    if bp != B:
        x = jnp.pad(x, ((0, bp - B), (0, 0)))
    grid = (pl.cdiv(bp, tb),)

    kernel = functools.partial(expert_kernel, f1=hidden_dim, f2=2 * hidden_dim)

    const = lambda i: (0, 0)   # weights / packed vectors: VMEM-resident across grid
    flops = 2 * bp * (din_p * fp + 3 * fp * fp)
    bytes_accessed = (bp * din_p * 2                       # x (bf16)
                      + (din_p * fp + 3 * fp * fp) * 2     # weights (bf16)
                      + 10 * fp * 4                        # packed vectors (f32)
                      + bp * fp * 4)                       # output (f32)

    out = pl.pallas_call(
        kernel,
        out_shape=jax.ShapeDtypeStruct((bp, fp), jnp.float32),
        grid=grid,
        in_specs=[
            pl.BlockSpec((tb, din_p), lambda i: (i, 0)),
            pl.BlockSpec((din_p, fp), const),
            pl.BlockSpec((fp, fp), const),
            pl.BlockSpec((fp, fp), const),
            pl.BlockSpec((fp, fp), const),
            pl.BlockSpec((10, fp), const),
        ],
        out_specs=pl.BlockSpec((tb, fp), lambda i: (i, 0)),
        compiler_params=pltpu.CompilerParams(
            dimension_semantics=("parallel",)),
        cost_estimate=pl.CostEstimate(
            flops=flops, transcendentals=3 * bp, bytes_accessed=bytes_accessed),
    )(x, kparams["w1"], kparams["w2"], kparams["w3"], kparams["w4"],
      kparams["vecs"])

    return out[:B, :out_dim]


def init_expert_params(key, input_dim, hidden_dim, out_dim):
    """PyTorch nn.Linear default init (uniform +/- 1/sqrt(fan_in)); weights
    stored (in, out).  LayerNorm: gamma=1, beta=0.  Returned at TRUE sizes in
    f32 (see pack_expert_params for the kernel layout)."""
    def linear(k, fan_in, fan_out):
        kw, kb = jax.random.split(k)
        bound = 1.0 / jnp.sqrt(fan_in)
        w = jax.random.uniform(kw, (fan_in, fan_out), jnp.float32, -bound, bound)
        b = jax.random.uniform(kb, (fan_out,), jnp.float32, -bound, bound)
        return w, b

    k1, k2, k3, k4 = jax.random.split(key, 4)
    w1, b1 = linear(k1, input_dim, hidden_dim)
    w2, b2 = linear(k2, hidden_dim, hidden_dim * 2)
    w3, b3 = linear(k3, hidden_dim * 2, hidden_dim)
    w4, b4 = linear(k4, hidden_dim, out_dim)
    return dict(
        w1=w1, b1=b1, g1=jnp.ones((hidden_dim,), jnp.float32),
        be1=jnp.zeros((hidden_dim,), jnp.float32),
        w2=w2, b2=b2, g2=jnp.ones((hidden_dim * 2,), jnp.float32),
        be2=jnp.zeros((hidden_dim * 2,), jnp.float32),
        w3=w3, b3=b3, g3=jnp.ones((hidden_dim,), jnp.float32),
        be3=jnp.zeros((hidden_dim,), jnp.float32),
        w4=w4, b4=b4,
    )


def pack_expert_params(raw, input_dim, hidden_dim, out_dim):
    """Zero-pad every feature dim to a common 128-lane-dense width and pack
    the ten per-layer vectors (bias / gamma / beta) into one (10, Fp) f32
    array.  Weights are cast to bf16 for the MXU."""
    din_p = _round_up(input_dim, _LANE)
    fp = max(_round_up(hidden_dim, _LANE),
             _round_up(2 * hidden_dim, _LANE),
             _round_up(out_dim, _LANE))

    def pad_w(w, rows, cols):
        return jnp.pad(w, ((0, rows - w.shape[0]),
                           (0, cols - w.shape[1]))).astype(jnp.bfloat16)

    def pad_v(v):
        return jnp.pad(v, (0, fp - v.shape[0]))[None, :]

    vecs = jnp.concatenate(
        [pad_v(raw[k]) for k in
         ("b1", "g1", "be1", "b2", "g2", "be2", "b3", "g3", "be3", "b4")],
        axis=0).astype(jnp.float32)                 # (10, Fp)
    return dict(
        w1=pad_w(raw["w1"], din_p, fp),
        w2=pad_w(raw["w2"], fp, fp),
        w3=pad_w(raw["w3"], fp, fp),
        w4=pad_w(raw["w4"], fp, fp),
        vecs=vecs,
    )


def expert_reference(x, raw, input_dim):
    """Pure-JAX reference at true (unpadded) sizes, mirroring the kernel's
    bf16 MXU inputs (bf16 weights / activations, f32 accumulation)."""
    x = _fixup_input(x, input_dim)

    def dense(h, w, b):
        return jnp.dot(h.astype(jnp.bfloat16), w.astype(jnp.bfloat16),
                       preferred_element_type=jnp.float32) + b

    def ln(h, g, b):
        mu = jnp.mean(h, axis=-1, keepdims=True)
        var = jnp.mean(jnp.square(h - mu), axis=-1, keepdims=True)
        return (h - mu) * jax.lax.rsqrt(var + _LN_EPS) * g + b

    h = ln(jnp.maximum(dense(x, raw["w1"], raw["b1"]), 0.0), raw["g1"], raw["be1"])
    h = ln(jnp.maximum(dense(h, raw["w2"], raw["b2"]), 0.0), raw["g2"], raw["be2"])
    h = ln(jnp.maximum(dense(h, raw["w3"], raw["b3"]), 0.0), raw["g3"], raw["be3"])
    return dense(h, raw["w4"], raw["b4"])


if __name__ == "__main__":
    key = jax.random.PRNGKey(0)
    kx, kp = jax.random.split(key)

    # Input is NCHW-like (B, C, H, W) = (2, 4, 16, 16); forward flattens it to
    # (B, 1024), which equals input_dim, so no pooling/padding glue triggers.
    B, C, H, W = 2, 4, 16, 16
    input_dim = C * H * W          # 1024
    hidden_dim = 32
    out_dim = 16

    x = jax.random.normal(kx, (B, C, H, W), jnp.float32)
    raw = init_expert_params(kp, input_dim, hidden_dim, out_dim)
    kparams = pack_expert_params(raw, input_dim, hidden_dim, out_dim)

    out = expert_forward(x, kparams, input_dim=input_dim,
                         hidden_dim=hidden_dim, out_dim=out_dim)
    jax.block_until_ready(out)

    assert out.shape == (B, out_dim)
    assert jnp.all(jnp.isfinite(out))

    ref = expert_reference(x, raw, input_dim)
    max_err = float(jnp.max(jnp.abs(out - ref)))
    assert max_err < 2e-2, f"max abs err vs reference: {max_err}"

    print("KERNEL_OK")
</pallas_src>

<mosaic_0001>
module attributes {stable_mosaic.version = 11 : i64} {
  func.func @expert_kernel(%arg0: i32, %arg1: memref<8x1024xbf16, #tpu.memory_space<vmem>>, %arg2: memref<1024x128xbf16, #tpu.memory_space<vmem>>, %arg3: memref<128x128xbf16, #tpu.memory_space<vmem>>, %arg4: memref<128x128xbf16, #tpu.memory_space<vmem>>, %arg5: memref<128x128xbf16, #tpu.memory_space<vmem>>, %arg6: memref<10x128xf32, #tpu.memory_space<vmem>>, %arg7: memref<8x128xf32, #tpu.memory_space<vmem>>) attributes {dimension_semantics = [#tpu.dimension_semantics<parallel>], iteration_bounds = array<i64: 1>, scalar_prefetch = 0 : i64, scratch_operands = 0 : i64, tpu.core_type = #tpu.core_type<tc>, window_params = [{transform_indices = @transform_0, window_bounds = array<i64: 8, 1024>}, {pipeline_mode = #tpu.pipeline_mode<synchronous>, transform_indices = @transform_1, window_bounds = array<i64: 1024, 128>}, {pipeline_mode = #tpu.pipeline_mode<synchronous>, transform_indices = @transform_2, window_bounds = array<i64: 128, 128>}, {pipeline_mode = #tpu.pipeline_mode<synchronous>, transform_indices = @transform_3, window_bounds = array<i64: 128, 128>}, {pipeline_mode = #tpu.pipeline_mode<synchronous>, transform_indices = @transform_4, window_bounds = array<i64: 128, 128>}, {pipeline_mode = #tpu.pipeline_mode<synchronous>, transform_indices = @transform_5, window_bounds = array<i64: 10, 128>}, {transform_indices = @transform_6, window_bounds = array<i64: 8, 128>}]} {
    %c0 = arith.constant 0 : index
    %c0_0 = arith.constant 0 : index
    %0 = vector.load %arg1[%c0, %c0_0] : memref<8x1024xbf16, #tpu.memory_space<vmem>>, vector<8x1024xbf16>
    %c0_1 = arith.constant 0 : index
    %c0_2 = arith.constant 0 : index
    %1 = vector.load %arg2[%c0_1, %c0_2] : memref<1024x128xbf16, #tpu.memory_space<vmem>>, vector<1024x128xbf16>
    %cst = arith.constant dense<0.000000e+00> : vector<8x128xf32>
    %2 = tpu.matmul %0, %1, %cst {dimension_numbers = #tpu.dot_dimension_numbers<[1], [0], [0], [1], [0, 0, 1, 1], [], []>} : vector<8x1024xbf16>, vector<1024x128xbf16>, vector<8x128xf32> -> vector<8x128xf32>
    %c0_3 = arith.constant 0 : index
    %c0_4 = arith.constant 0 : index
    %3 = vector.load %arg6[%c0_3, %c0_4] : memref<10x128xf32, #tpu.memory_space<vmem>>, vector<1x128xf32>
    %4 = vector.broadcast %3 : vector<1x128xf32> to vector<8x128xf32>
    %5 = arith.addf %2, %4 : vector<8x128xf32>
    %cst_5 = arith.constant 0.000000e+00 : f32
    %6 = vector.broadcast %cst_5 : f32 to vector<8x128xf32>
    %7 = arith.maximumf %5, %6 : vector<8x128xf32>
    %c1 = arith.constant 1 : index
    %c0_6 = arith.constant 0 : index
    %8 = vector.load %arg6[%c1, %c0_6] : memref<10x128xf32, #tpu.memory_space<vmem>>, vector<1x128xf32>
    %c2 = arith.constant 2 : index
    %c0_7 = arith.constant 0 : index
    %9 = vector.load %arg6[%c2, %c0_7] : memref<10x128xf32, #tpu.memory_space<vmem>>, vector<1x128xf32>
    %cst_8 = arith.constant dense<0.000000e+00> : vector<8xf32>
    %10 = vector.multi_reduction <add>, %7, %cst_8 [1] : vector<8x128xf32> to vector<8xf32>
    %11 = vector.shape_cast %10 : vector<8xf32> to vector<8x1xf32>
    %cst_9 = arith.constant 3.125000e-02 : f32
    %12 = vector.broadcast %cst_9 : f32 to vector<8x1xf32>
    %13 = arith.mulf %11, %12 : vector<8x1xf32>
    %14 = arith.mulf %7, %7 : vector<8x128xf32>
    %cst_10 = arith.constant dense<0.000000e+00> : vector<8xf32>
    %15 = vector.multi_reduction <add>, %14, %cst_10 [1] : vector<8x128xf32> to vector<8xf32>
    %16 = vector.shape_cast %15 : vector<8xf32> to vector<8x1xf32>
    %cst_11 = arith.constant 3.125000e-02 : f32
    %17 = vector.broadcast %cst_11 : f32 to vector<8x1xf32>
    %18 = arith.mulf %16, %17 : vector<8x1xf32>
    %19 = arith.mulf %13, %13 : vector<8x1xf32>
    %20 = arith.subf %18, %19 : vector<8x1xf32>
    %cst_12 = arith.constant 9.99999974E-6 : f32
    %21 = vector.broadcast %cst_12 : f32 to vector<8x1xf32>
    %22 = arith.addf %20, %21 : vector<8x1xf32>
    %23 = math.rsqrt %22 : vector<8x1xf32>
    %24 = vector.broadcast %8 : vector<1x128xf32> to vector<8x128xf32>
    %25 = vector.broadcast %23 : vector<8x1xf32> to vector<8x128xf32>
    %26 = arith.mulf %24, %25 : vector<8x128xf32>
    %27 = vector.broadcast %13 : vector<8x1xf32> to vector<8x128xf32>
    %28 = arith.mulf %27, %26 : vector<8x128xf32>
    %29 = vector.broadcast %9 : vector<1x128xf32> to vector<8x128xf32>
    %30 = arith.subf %29, %28 : vector<8x128xf32>
    %31 = arith.mulf %7, %26 : vector<8x128xf32>
    %32 = arith.addf %31, %30 : vector<8x128xf32>
    %33 = arith.truncf %32 : vector<8x128xf32> to vector<8x128xbf16>
    %c0_13 = arith.constant 0 : index
    %c0_14 = arith.constant 0 : index
    %34 = vector.load %arg3[%c0_13, %c0_14] : memref<128x128xbf16, #tpu.memory_space<vmem>>, vector<128x128xbf16>
    %cst_15 = arith.constant dense<0.000000e+00> : vector<8x128xf32>
    %35 = tpu.matmul %33, %34, %cst_15 {dimension_numbers = #tpu.dot_dimension_numbers<[1], [0], [0], [1], [0, 0, 1, 1], [], []>} : vector<8x128xbf16>, vector<128x128xbf16>, vector<8x128xf32> -> vector<8x128xf32>
    %c3 = arith.constant 3 : index
    %c0_16 = arith.constant 0 : index
    %36 = vector.load %arg6[%c3, %c0_16] : memref<10x128xf32, #tpu.memory_space<vmem>>, vector<1x128xf32>
    %37 = vector.broadcast %36 : vector<1x128xf32> to vector<8x128xf32>
    %38 = arith.addf %35, %37 : vector<8x128xf32>
    %cst_17 = arith.constant 0.000000e+00 : f32
    %39 = vector.broadcast %cst_17 : f32 to vector<8x128xf32>
    %40 = arith.maximumf %38, %39 : vector<8x128xf32>
    %c4 = arith.constant 4 : index
    %c0_18 = arith.constant 0 : index
    %41 = vector.load %arg6[%c4, %c0_18] : memref<10x128xf32, #tpu.memory_space<vmem>>, vector<1x128xf32>
    %c5 = arith.constant 5 : index
    %c0_19 = arith.constant 0 : index
    %42 = vector.load %arg6[%c5, %c0_19] : memref<10x128xf32, #tpu.memory_space<vmem>>, vector<1x128xf32>
    %cst_20 = arith.constant dense<0.000000e+00> : vector<8xf32>
    %43 = vector.multi_reduction <add>, %40, %cst_20 [1] : vector<8x128xf32> to vector<8xf32>
    %44 = vector.shape_cast %43 : vector<8xf32> to vector<8x1xf32>
    %cst_21 = arith.constant 1.562500e-02 : f32
    %45 = vector.broadcast %cst_21 : f32 to vector<8x1xf32>
    %46 = arith.mulf %44, %45 : vector<8x1xf32>
    %47 = arith.mulf %40, %40 : vector<8x128xf32>
    %cst_22 = arith.constant dense<0.000000e+00> : vector<8xf32>
    %48 = vector.multi_reduction <add>, %47, %cst_22 [1] : vector<8x128xf32> to vector<8xf32>
    %49 = vector.shape_cast %48 : vector<8xf32> to vector<8x1xf32>
    %cst_23 = arith.constant 1.562500e-02 : f32
    %50 = vector.broadcast %cst_23 : f32 to vector<8x1xf32>
    %51 = arith.mulf %49, %50 : vector<8x1xf32>
    %52 = arith.mulf %46, %46 : vector<8x1xf32>
    %53 = arith.subf %51, %52 : vector<8x1xf32>
    %cst_24 = arith.constant 9.99999974E-6 : f32
    %54 = vector.broadcast %cst_24 : f32 to vector<8x1xf32>
    %55 = arith.addf %53, %54 : vector<8x1xf32>
    %56 = math.rsqrt %55 : vector<8x1xf32>
    %57 = vector.broadcast %41 : vector<1x128xf32> to vector<8x128xf32>
    %58 = vector.broadcast %56 : vector<8x1xf32> to vector<8x128xf32>
    %59 = arith.mulf %57, %58 : vector<8x128xf32>
    %60 = vector.broadcast %46 : vector<8x1xf32> to vector<8x128xf32>
    %61 = arith.mulf %60, %59 : vector<8x128xf32>
    %62 = vector.broadcast %42 : vector<1x128xf32> to vector<8x128xf32>
    %63 = arith.subf %62, %61 : vector<8x128xf32>
    %64 = arith.mulf %40, %59 : vector<8x128xf32>
    %65 = arith.addf %64, %63 : vector<8x128xf32>
    %66 = arith.truncf %65 : vector<8x128xf32> to vector<8x128xbf16>
    %c0_25 = arith.constant 0 : index
    %c0_26 = arith.constant 0 : index
    %67 = vector.load %arg4[%c0_25, %c0_26] : memref<128x128xbf16, #tpu.memory_space<vmem>>, vector<128x128xbf16>
    %cst_27 = arith.constant dense<0.000000e+00> : vector<8x128xf32>
    %68 = tpu.matmul %66, %67, %cst_27 {dimension_numbers = #tpu.dot_dimension_numbers<[1], [0], [0], [1], [0, 0, 1, 1], [], []>} : vector<8x128xbf16>, vector<128x128xbf16>, vector<8x128xf32> -> vector<8x128xf32>
    %c6 = arith.constant 6 : index
    %c0_28 = arith.constant 0 : index
    %69 = vector.load %arg6[%c6, %c0_28] : memref<10x128xf32, #tpu.memory_space<vmem>>, vector<1x128xf32>
    %70 = vector.broadcast %69 : vector<1x128xf32> to vector<8x128xf32>
    %71 = arith.addf %68, %70 : vector<8x128xf32>
    %cst_29 = arith.constant 0.000000e+00 : f32
    %72 = vector.broadcast %cst_29 : f32 to vector<8x128xf32>
    %73 = arith.maximumf %71, %72 : vector<8x128xf32>
    %c7 = arith.constant 7 : index
    %c0_30 = arith.constant 0 : index
    %74 = vector.load %arg6[%c7, %c0_30] : memref<10x128xf32, #tpu.memory_space<vmem>>, vector<1x128xf32>
    %c8 = arith.constant 8 : index
    %c0_31 = arith.constant 0 : index
    %75 = vector.load %arg6[%c8, %c0_31] : memref<10x128xf32, #tpu.memory_space<vmem>>, vector<1x128xf32>
    %cst_32 = arith.constant dense<0.000000e+00> : vector<8xf32>
    %76 = vector.multi_reduction <add>, %73, %cst_32 [1] : vector<8x128xf32> to vector<8xf32>
    %77 = vector.shape_cast %76 : vector<8xf32> to vector<8x1xf32>
    %cst_33 = arith.constant 3.125000e-02 : f32
    %78 = vector.broadcast %cst_33 : f32 to vector<8x1xf32>
    %79 = arith.mulf %77, %78 : vector<8x1xf32>
    %80 = arith.mulf %73, %73 : vector<8x128xf32>
    %cst_34 = arith.constant dense<0.000000e+00> : vector<8xf32>
    %81 = vector.multi_reduction <add>, %80, %cst_34 [1] : vector<8x128xf32> to vector<8xf32>
    %82 = vector.shape_cast %81 : vector<8xf32> to vector<8x1xf32>
    %cst_35 = arith.constant 3.125000e-02 : f32
    %83 = vector.broadcast %cst_35 : f32 to vector<8x1xf32>
    %84 = arith.mulf %82, %83 : vector<8x1xf32>
    %85 = arith.mulf %79, %79 : vector<8x1xf32>
    %86 = arith.subf %84, %85 : vector<8x1xf32>
    %cst_36 = arith.constant 9.99999974E-6 : f32
    %87 = vector.broadcast %cst_36 : f32 to vector<8x1xf32>
    %88 = arith.addf %86, %87 : vector<8x1xf32>
    %89 = math.rsqrt %88 : vector<8x1xf32>
    %90 = vector.broadcast %74 : vector<1x128xf32> to vector<8x128xf32>
    %91 = vector.broadcast %89 : vector<8x1xf32> to vector<8x128xf32>
    %92 = arith.mulf %90, %91 : vector<8x128xf32>
    %93 = vector.broadcast %79 : vector<8x1xf32> to vector<8x128xf32>
    %94 = arith.mulf %93, %92 : vector<8x128xf32>
    %95 = vector.broadcast %75 : vector<1x128xf32> to vector<8x128xf32>
    %96 = arith.subf %95, %94 : vector<8x128xf32>
    %97 = arith.mulf %73, %92 : vector<8x128xf32>
    %98 = arith.addf %97, %96 : vector<8x128xf32>
    %99 = arith.truncf %98 : vector<8x128xf32> to vector<8x128xbf16>
    %c0_37 = arith.constant 0 : index
    %c0_38 = arith.constant 0 : index
    %100 = vector.load %arg5[%c0_37, %c0_38] : memref<128x128xbf16, #tpu.memory_space<vmem>>, vector<128x128xbf16>
    %cst_39 = arith.constant dense<0.000000e+00> : vector<8x128xf32>
    %101 = tpu.matmul %99, %100, %cst_39 {dimension_numbers = #tpu.dot_dimension_numbers<[1], [0], [0], [1], [0, 0, 1, 1], [], []>} : vector<8x128xbf16>, vector<128x128xbf16>, vector<8x128xf32> -> vector<8x128xf32>
    %c9 = arith.constant 9 : index
    %c0_40 = arith.constant 0 : index
    %102 = vector.load %arg6[%c9, %c0_40] : memref<10x128xf32, #tpu.memory_space<vmem>>, vector<1x128xf32>
    %103 = vector.broadcast %102 : vector<1x128xf32> to vector<8x128xf32>
    %104 = arith.addf %101, %103 : vector<8x128xf32>
    %c0_41 = arith.constant 0 : index
    %c0_42 = arith.constant 0 : index
    %105 = vector.load %arg7[%c0_41, %c0_42] : memref<8x128xf32, #tpu.memory_space<vmem>>, vector<8x128xf32>
    tpu.vector_store %arg7[%c0_41, %c0_42], %104 {strides = array<i32>} : memref<8x128xf32, #tpu.memory_space<vmem>>, vector<8x128xf32>,
    return
  }
  func.func @transform_0(%arg0: i32) -> (i32, i32) {
    %c0_i32 = arith.constant 0 : i32
    %c0_i32_0 = arith.constant 0 : i32
    return %arg0, %c0_i32 : i32, i32
  }
  func.func @transform_1(%arg0: i32) -> (i32, i32) {
    %c0_i32 = arith.constant 0 : i32
    %c0_i32_0 = arith.constant 0 : i32
    %c0_i32_1 = arith.constant 0 : i32
    return %c0_i32, %c0_i32_0 : i32, i32
  }
  func.func @transform_2(%arg0: i32) -> (i32, i32) {
    %c0_i32 = arith.constant 0 : i32
    %c0_i32_0 = arith.constant 0 : i32
    %c0_i32_1 = arith.constant 0 : i32
    return %c0_i32, %c0_i32_0 : i32, i32
  }
  func.func @transform_3(%arg0: i32) -> (i32, i32) {
    %c0_i32 = arith.constant 0 : i32
    %c0_i32_0 = arith.constant 0 : i32
    %c0_i32_1 = arith.constant 0 : i32
    return %c0_i32, %c0_i32_0 : i32, i32
  }
  func.func @transform_4(%arg0: i32) -> (i32, i32) {
    %c0_i32 = arith.constant 0 : i32
    %c0_i32_0 = arith.constant 0 : i32
    %c0_i32_1 = arith.constant 0 : i32
    return %c0_i32, %c0_i32_0 : i32, i32
  }
  func.func @transform_5(%arg0: i32) -> (i32, i32) {
    %c0_i32 = arith.constant 0 : i32
    %c0_i32_0 = arith.constant 0 : i32
    %c0_i32_1 = arith.constant 0 : i32
    return %c0_i32, %c0_i32_0 : i32, i32
  }
  func.func @transform_6(%arg0: i32) -> (i32, i32) {
    %c0_i32 = arith.constant 0 : i32
    %c0_i32_0 = arith.constant 0 : i32
    return %arg0, %c0_i32 : i32, i32
  }
}

</mosaic_0001>

<llo_original>
// kernel: expert_forward.1
$region0: #{expert_forward.1}
  #allocation0 [shape = 'u32[]', space=smem, size = 0x4, offset = 0x4, fixed_abs, tag = 'smem constant byte address 0x4 - core index']
  #allocation1 [shape = 'u32[144,128]{1,0:T(1,128)}', space=vmem, size = 0x12000, scoped, tag = 'internal scratch']
  %s0 = inlined_call_operand.vmem [shape: bf16[8,1024], index: 0, kind: input, shape index: {}]
  %s1 = inlined_call_operand.hbm [shape: bf16[1024,128], index: 1, kind: input, shape index: {}]
  %s2 = inlined_call_operand.vmem [shape: bf16[128,128], index: 2, kind: input, shape index: {}]
  %s3 = inlined_call_operand.vmem [shape: bf16[128,128], index: 3, kind: input, shape index: {}]
  %s4 = inlined_call_operand.vmem [shape: bf16[128,128], index: 4, kind: input, shape index: {}]
  %s5 = inlined_call_operand.vmem [shape: f32[10,128], index: 5, kind: input, shape index: {}]
  %s6 = inlined_call_operand.vmem [shape: f32[8,128], index: 6, kind: output, shape index: {}]
  %s7 = sld [smem:[#allocation0]]
  $region38: #{expert_forward.1} parent=0
    _
  %s9 = ssub.s32 1, %s7
  %s10 = scalar_select 0, %s9, %s7
  $region1: #{expert_forward.1} parent=0
    #allocation2 [shape = 'u8[262144]{0}', space=vmem, size = 0x40000, scoped, tag = 'input window, operand 1, single buffered']
    #allocation3 [shape = 's32[1]{0}', space=sflag, size = 0x4, scoped, tag = 'scoped memory for expert_forward.1']
    %11 = vsyncpa [#allocation3], 0
    // Predicated region
    $region2: #{expert_forward.1} parent=1 // pred_check
      _
    $region3: #{expert_forward.1} parent=1 // pred_check_branch
      %13 = sbr.rel (0) target = $region5
    $region4: #{expert_forward.1} parent=1 // pred_region
      _
    $region5: #{expert_forward.1} parent=1 // pred_fallthru
      _
    // Predicated region
    $region6: #{expert_forward.1} parent=1 // pred_check
      _
    $region7: #{expert_forward.1} parent=1 // pred_check_branch
      %15 = sbr.rel (0) target = $region9
    $region8: #{expert_forward.1} parent=1 // pred_region
      %s17 = ssub.s32 8192, 8192
      %18 = vsyncadd [#allocation3], %s17
      %s19 = sshll.u32 [#allocation2], 4
      %s20 = int_to_ptr.vmem [resolvable:$true] %s19
      %25 = dma.hbm_to_vmem [thread:$0]  %s1, 8192, %s20, [#allocation3], 64, 64, 4
    $region9: #{expert_forward.1} parent=1 // pred_fallthru
      _
    // Predicated region
    $region10: #{expert_forward.1} parent=1 // pred_check
      _
    $region11: #{expert_forward.1} parent=1 // pred_check_branch
      %27 = sbr.rel (0) target = $region13
    $region12: #{expert_forward.1} parent=1 // pred_region
      _
    $region13: #{expert_forward.1} parent=1 // pred_fallthru
      _
    // Predicated region
    $region14: #{expert_forward.1} parent=1 // pred_check
      _
    $region15: #{expert_forward.1} parent=1 // pred_check_branch
      %29 = sbr.rel (0) target = $region17
    $region16: #{expert_forward.1} parent=1 // pred_region
      _
    $region17: #{expert_forward.1} parent=1 // pred_fallthru
      _
    // Predicated region
    $region18: #{expert_forward.1} parent=1 // pred_check
      _
    $region19: #{expert_forward.1} parent=1 // pred_check_branch
      %31 = sbr.rel (0) target = $region21
    $region20: #{expert_forward.1} parent=1 // pred_region
      _
    $region21: #{expert_forward.1} parent=1 // pred_fallthru
      _
    // Predicated region
    $region22: #{expert_forward.1} parent=1 // pred_check
      _
    $region23: #{expert_forward.1} parent=1 // pred_check_branch
      %33 = sbr.rel (0) target = $region25
    $region24: #{expert_forward.1} parent=1 // pred_region
      _
    $region25: #{expert_forward.1} parent=1 // pred_fallthru
      _
    // Predicated region
    $region26: #{expert_forward.1} parent=1 // pred_check
      _
    $region27: #{expert_forward.1} parent=1 // pred_check_branch
      %35 = sbr.rel (0) target = $region29
    $region28: #{expert_forward.1} parent=1 // pred_region
      %36 = dma.done [#allocation3], 8192
    $region29: #{expert_forward.1} parent=1 // pred_fallthru
      _
    %v38 = vld [vmem:[%s0] sm:$0xff]
    %v39 = vld [vmem:[%s0 + $0x8] sm:$0xff]
    %v40 = vld [vmem:[%s0 + $0x10] sm:$0xff]
    %v41 = vld [vmem:[%s0 + $0x18] sm:$0xff]
    %v42 = vld [vmem:[#allocation2] sm:$0xf]
    %v43 = vld [vmem:[#allocation2 + $0x4] sm:$0xf]
    %v44 = vld [vmem:[#allocation2 + $0x8] sm:$0xf]
    %v45 = vld [vmem:[#allocation2 + $0xc] sm:$0xf]
    %v46 = vld [vmem:[#allocation2 + $0x10] sm:$0xf]
    %v47 = vld [vmem:[#allocation2 + $0x14] sm:$0xf]
    %v48 = vld [vmem:[#allocation2 + $0x18] sm:$0xf]
    %v49 = vld [vmem:[#allocation2 + $0x1c] sm:$0xf]
    %v50 = vld [vmem:[#allocation2 + $0x20] sm:$0xf]
    %v51 = vld [vmem:[#allocation2 + $0x24] sm:$0xf]
    %v52 = vld [vmem:[#allocation2 + $0x28] sm:$0xf]
    %v53 = vld [vmem:[#allocation2 + $0x2c] sm:$0xf]
    %v54 = vld [vmem:[#allocation2 + $0x30] sm:$0xf]
    %v55 = vld [vmem:[#allocation2 + $0x34] sm:$0xf]
    %v56 = vld [vmem:[#allocation2 + $0x38] sm:$0xf]
    %v57 = vld [vmem:[#allocation2 + $0x3c] sm:$0xf]
    %v58 = vld [vmem:[#allocation2 + $0x40] sm:$0xf]
    %v59 = vld [vmem:[#allocation2 + $0x44] sm:$0xf]
    %v60 = vld [vmem:[#allocation2 + $0x48] sm:$0xf]
    %v61 = vld [vmem:[#allocation2 + $0x4c] sm:$0xf]
    %v62 = vld [vmem:[#allocation2 + $0x50] sm:$0xf]
    %v63 = vld [vmem:[#allocation2 + $0x54] sm:$0xf]
    %v64 = vld [vmem:[#allocation2 + $0x58] sm:$0xf]
    %v65 = vld [vmem:[#allocation2 + $0x5c] sm:$0xf]
    %v66 = vld [vmem:[#allocation2 + $0x60] sm:$0xf]
    %v67 = vld [vmem:[#allocation2 + $0x64] sm:$0xf]
    %v68 = vld [vmem:[#allocation2 + $0x68] sm:$0xf]
    %v69 = vld [vmem:[#allocation2 + $0x6c] sm:$0xf]
    %v70 = vld [vmem:[#allocation2 + $0x70] sm:$0xf]
    %v71 = vld [vmem:[#allocation2 + $0x74] sm:$0xf]
    %v72 = vld [vmem:[#allocation2 + $0x78] sm:$0xf]
    %v73 = vld [vmem:[#allocation2 + $0x7c] sm:$0xf]
    %v74 = vld [vmem:[#allocation2 + $0x80] sm:$0xf]
    %v75 = vld [vmem:[#allocation2 + $0x84] sm:$0xf]
    %v76 = vld [vmem:[#allocation2 + $0x88] sm:$0xf]
    %v77 = vld [vmem:[#allocation2 + $0x8c] sm:$0xf]
    %v78 = vld [vmem:[#allocation2 + $0x90] sm:$0xf]
    %v79 = vld [vmem:[#allocation2 + $0x94] sm:$0xf]
    %v80 = vld [vmem:[#allocation2 + $0x98] sm:$0xf]
    %v81 = vld [vmem:[#allocation2 + $0x9c] sm:$0xf]
    %v82 = vld [vmem:[#allocation2 + $0xa0] sm:$0xf]
    %v83 = vld [vmem:[#allocation2 + $0xa4] sm:$0xf]
    %v84 = vld [vmem:[#allocation2 + $0xa8] sm:$0xf]
    %v85 = vld [vmem:[#allocation2 + $0xac] sm:$0xf]
    %v86 = vld [vmem:[#allocation2 + $0xb0] sm:$0xf]
    %v87 = vld [vmem:[#allocation2 + $0xb4] sm:$0xf]
    %v88 = vld [vmem:[#allocation2 + $0xb8] sm:$0xf]
    %v89 = vld [vmem:[#allocation2 + $0xbc] sm:$0xf]
    %v90 = vld [vmem:[#allocation2 + $0xc0] sm:$0xf]
    %v91 = vld [vmem:[#allocation2 + $0xc4] sm:$0xf]
    %v92 = vld [vmem:[#allocation2 + $0xc8] sm:$0xf]
    %v93 = vld [vmem:[#allocation2 + $0xcc] sm:$0xf]
    %v94 = vld [vmem:[#allocation2 + $0xd0] sm:$0xf]
    %v95 = vld [vmem:[#allocation2 + $0xd4] sm:$0xf]
    %v96 = vld [vmem:[#allocation2 + $0xd8] sm:$0xf]
    %v97 = vld [vmem:[#allocation2 + $0xdc] sm:$0xf]
    %v98 = vld [vmem:[#allocation2 + $0xe0] sm:$0xf]
    %v99 = vld [vmem:[#allocation2 + $0xe4] sm:$0xf]
    %v100 = vld [vmem:[#allocation2 + $0xe8] sm:$0xf]
    %v101 = vld [vmem:[#allocation2 + $0xec] sm:$0xf]
    %v102 = vld [vmem:[#allocation2 + $0xf0] sm:$0xf]
    %v103 = vld [vmem:[#allocation2 + $0xf4] sm:$0xf]
    %v104 = vld [vmem:[#allocation2 + $0xf8] sm:$0xf]
    %v105 = vld [vmem:[#allocation2 + $0xfc] sm:$0xf]
    %v106 = vld [vmem:[#allocation2 + $0x100] sm:$0xf]
    %v107 = vld [vmem:[#allocation2 + $0x104] sm:$0xf]
    %v108 = vld [vmem:[#allocation2 + $0x108] sm:$0xf]
    %v109 = vld [vmem:[#allocation2 + $0x10c] sm:$0xf]
    %v110 = vld [vmem:[#allocation2 + $0x110] sm:$0xf]
    %v111 = vld [vmem:[#allocation2 + $0x114] sm:$0xf]
    %v112 = vld [vmem:[#allocation2 + $0x118] sm:$0xf]
    %v113 = vld [vmem:[#allocation2 + $0x11c] sm:$0xf]
    %v114 = vld [vmem:[#allocation2 + $0x120] sm:$0xf]
    %v115 = vld [vmem:[#allocation2 + $0x124] sm:$0xf]
    %v116 = vld [vmem:[#allocation2 + $0x128] sm:$0xf]
    %v117 = vld [vmem:[#allocation2 + $0x12c] sm:$0xf]
    %v118 = vld [vmem:[#allocation2 + $0x130] sm:$0xf]
    %v119 = vld [vmem:[#allocation2 + $0x134] sm:$0xf]
    %v120 = vld [vmem:[#allocation2 + $0x138] sm:$0xf]
    %v121 = vld [vmem:[#allocation2 + $0x13c] sm:$0xf]
    %v122 = vld [vmem:[#allocation2 + $0x140] sm:$0xf]
    %v123 = vld [vmem:[#allocation2 + $0x144] sm:$0xf]
    %v124 = vld [vmem:[#allocation2 + $0x148] sm:$0xf]
    %v125 = vld [vmem:[#allocation2 + $0x14c] sm:$0xf]
    %v126 = vld [vmem:[#allocation2 + $0x150] sm:$0xf]
    %v127 = vld [vmem:[#allocation2 + $0x154] sm:$0xf]
    %v128 = vld [vmem:[#allocation2 + $0x158] sm:$0xf]
    %v129 = vld [vmem:[#allocation2 + $0x15c] sm:$0xf]
    %v130 = vld [vmem:[#allocation2 + $0x160] sm:$0xf]
    %v131 = vld [vmem:[#allocation2 + $0x164] sm:$0xf]
    %v132 = vld [vmem:[#allocation2 + $0x168] sm:$0xf]
    %v133 = vld [vmem:[#allocation2 + $0x16c] sm:$0xf]
    %v134 = vld [vmem:[#allocation2 + $0x170] sm:$0xf]
    %v135 = vld [vmem:[#allocation2 + $0x174] sm:$0xf]
    %v136 = vld [vmem:[#allocation2 + $0x178] sm:$0xf]
    %v137 = vld [vmem:[#allocation2 + $0x17c] sm:$0xf]
    %v138 = vld [vmem:[#allocation2 + $0x180] sm:$0xf]
    %v139 = vld [vmem:[#allocation2 + $0x184] sm:$0xf]
    %v140 = vld [vmem:[#allocation2 + $0x188] sm:$0xf]
    %v141 = vld [vmem:[#allocation2 + $0x18c] sm:$0xf]
    %v142 = vld [vmem:[#allocation2 + $0x190] sm:$0xf]
    %v143 = vld [vmem:[#allocation2 + $0x194] sm:$0xf]
    %v144 = vld [vmem:[#allocation2 + $0x198] sm:$0xf]
    %v145 = vld [vmem:[#allocation2 + $0x19c] sm:$0xf]
    %v146 = vld [vmem:[#allocation2 + $0x1a0] sm:$0xf]
    %v147 = vld [vmem:[#allocation2 + $0x1a4] sm:$0xf]
    %v148 = vld [vmem:[#allocation2 + $0x1a8] sm:$0xf]
    %v149 = vld [vmem:[#allocation2 + $0x1ac] sm:$0xf]
    %v150 = vld [vmem:[#allocation2 + $0x1b0] sm:$0xf]
    %v151 = vld [vmem:[#allocation2 + $0x1b4] sm:$0xf]
    %v152 = vld [vmem:[#allocation2 + $0x1b8] sm:$0xf]
    %v153 = vld [vmem:[#allocation2 + $0x1bc] sm:$0xf]
    %v154 = vld [vmem:[#allocation2 + $0x1c0] sm:$0xf]
    %v155 = vld [vmem:[#allocation2 + $0x1c4] sm:$0xf]
    %v156 = vld [vmem:[#allocation2 + $0x1c8] sm:$0xf]
    %v157 = vld [vmem:[#allocation2 + $0x1cc] sm:$0xf]
    %v158 = vld [vmem:[#allocation2 + $0x1d0] sm:$0xf]
    %v159 = vld [vmem:[#allocation2 + $0x1d4] sm:$0xf]
    %v160 = vld [vmem:[#allocation2 + $0x1d8] sm:$0xf]
    %v161 = vld [vmem:[#allocation2 + $0x1dc] sm:$0xf]
    %v162 = vld [vmem:[#allocation2 + $0x1e0] sm:$0xf]
    %v163 = vld [vmem:[#allocation2 + $0x1e4] sm:$0xf]
    %v164 = vld [vmem:[#allocation2 + $0x1e8] sm:$0xf]
    %v165 = vld [vmem:[#allocation2 + $0x1ec] sm:$0xf]
    %v166 = vld [vmem:[#allocation2 + $0x1f0] sm:$0xf]
    %v167 = vld [vmem:[#allocation2 + $0x1f4] sm:$0xf]
    %v168 = vld [vmem:[#allocation2 + $0x1f8] sm:$0xf]
    %v169 = vld [vmem:[#allocation2 + $0x1fc] sm:$0xf]
    %v170 = vld [vmem:[%s5] sm:$0x1]
    %v171 = vlaneseq
    %v172 = vshrl.u32 %v171, 7
    %v173 = vsub.s32 0, %v172
    %v174 = vrot.slane %v170, %v173
    %v179 = vunpack.c.l.b16 %v38
    %v180 = vunpack.c.h.b16 %v38
    %v181 = vunpack.c.l.b16 %v39
    %v182 = vunpack.c.h.b16 %v39
    %v183 = vunpack.c.l.b16 %v40
    %v184 = vunpack.c.h.b16 %v40
    %v185 = vunpack.c.l.b16 %v41
    %v186 = vunpack.c.h.b16 %v41
    %v187 = vpack.c.b16 %v179, %v179
    %v188 = vpack.c.b16 %v180, %v180
    %v189 = vpack.c.b16 %v181, %v181
    %v190 = vpack.c.b16 %v182, %v182
    %v191 = vpack.c.b16 %v183, %v183
    %v192 = vpack.c.b16 %v184, %v184
    %v193 = vpack.c.b16 %v185, %v185
    %v194 = vpack.c.b16 %v186, %v186
    %v331 = vunpack.c.l.b16 %v42
    %v332 = vunpack.c.l.b16 %v43
    %v333 = vunpack.c.l.b16 %v44
    %v334 = vunpack.c.l.b16 %v45
    %v335 = vunpack.c.l.b16 %v46
    %v336 = vunpack.c.l.b16 %v47
    %v337 = vunpack.c.l.b16 %v48
    %v338 = vunpack.c.l.b16 %v49
    %v339 = vunpack.c.l.b16 %v50
    %v340 = vunpack.c.l.b16 %v51
    %v341 = vunpack.c.l.b16 %v52
    %v342 = vunpack.c.l.b16 %v53
    %v343 = vunpack.c.l.b16 %v54
    %v344 = vunpack.c.l.b16 %v55
    %v345 = vunpack.c.l.b16 %v56
    %v346 = vunpack.c.l.b16 %v57
    %v347 = vunpack.c.l.b16 %v58
    %v348 = vunpack.c.l.b16 %v59
    %v349 = vunpack.c.l.b16 %v60
    %v350 = vunpack.c.l.b16 %v61
    %v351 = vunpack.c.l.b16 %v62
    %v352 = vunpack.c.l.b16 %v63
    %v353 = vunpack.c.l.b16 %v64
    %v354 = vunpack.c.l.b16 %v65
    %v355 = vunpack.c.l.b16 %v66
    %v356 = vunpack.c.l.b16 %v67
    %v357 = vunpack.c.l.b16 %v68
    %v358 = vunpack.c.l.b16 %v69
    %v359 = vunpack.c.l.b16 %v70
    %v360 = vunpack.c.l.b16 %v71
    %v361 = vunpack.c.l.b16 %v72
    %v362 = vunpack.c.l.b16 %v73
    %v363 = vunpack.c.l.b16 %v74
    %v364 = vunpack.c.l.b16 %v75
    %v365 = vunpack.c.l.b16 %v76
    %v366 = vunpack.c.l.b16 %v77
    %v367 = vunpack.c.l.b16 %v78
    %v368 = vunpack.c.l.b16 %v79
    %v369 = vunpack.c.l.b16 %v80
    %v370 = vunpack.c.l.b16 %v81
    %v371 = vunpack.c.l.b16 %v82
    %v372 = vunpack.c.l.b16 %v83
    %v373 = vunpack.c.l.b16 %v84
    %v374 = vunpack.c.l.b16 %v85
    %v375 = vunpack.c.l.b16 %v86
    %v376 = vunpack.c.l.b16 %v87
    %v377 = vunpack.c.l.b16 %v88
    %v378 = vunpack.c.l.b16 %v89
    %v379 = vunpack.c.l.b16 %v90
    %v380 = vunpack.c.l.b16 %v91
    %v381 = vunpack.c.l.b16 %v92
    %v382 = vunpack.c.l.b16 %v93
    %v383 = vunpack.c.l.b16 %v94
    %v384 = vunpack.c.l.b16 %v95
    %v385 = vunpack.c.l.b16 %v96
    %v386 = vunpack.c.l.b16 %v97
    %v387 = vunpack.c.l.b16 %v98
    %v388 = vunpack.c.l.b16 %v99
    %v389 = vunpack.c.l.b16 %v100
    %v390 = vunpack.c.l.b16 %v101
    %v391 = vunpack.c.l.b16 %v102
    %v392 = vunpack.c.l.b16 %v103
    %v393 = vunpack.c.l.b16 %v104
    %v394 = vunpack.c.l.b16 %v105
    %v395 = vunpack.c.l.b16 %v106
    %v396 = vunpack.c.l.b16 %v107
    %v397 = vunpack.c.l.b16 %v108
    %v398 = vunpack.c.l.b16 %v109
    %v399 = vunpack.c.l.b16 %v110
    %v400 = vunpack.c.l.b16 %v111
    %v401 = vunpack.c.l.b16 %v112
    %v402 = vunpack.c.l.b16 %v113
    %v403 = vunpack.c.l.b16 %v114
    %v404 = vunpack.c.l.b16 %v115
    %v405 = vunpack.c.l.b16 %v116
    %v406 = vunpack.c.l.b16 %v117
    %v407 = vunpack.c.l.b16 %v118
    %v408 = vunpack.c.l.b16 %v119
    %v409 = vunpack.c.l.b16 %v120
    %v410 = vunpack.c.l.b16 %v121
    %v411 = vunpack.c.l.b16 %v122
    %v412 = vunpack.c.l.b16 %v123
    %v413 = vunpack.c.l.b16 %v124
    %v414 = vunpack.c.l.b16 %v125
    %v415 = vunpack.c.l.b16 %v126
    %v416 = vunpack.c.l.b16 %v127
    %v417 = vunpack.c.l.b16 %v128
    %v418 = vunpack.c.l.b16 %v129
    %v419 = vunpack.c.l.b16 %v130
    %v420 = vunpack.c.l.b16 %v131
    %v421 = vunpack.c.l.b16 %v132
    %v422 = vunpack.c.l.b16 %v133
    %v423 = vunpack.c.l.b16 %v134
    %v424 = vunpack.c.l.b16 %v135
    %v425 = vunpack.c.l.b16 %v136
    %v426 = vunpack.c.l.b16 %v137
    %v427 = vunpack.c.l.b16 %v138
    %v428 = vunpack.c.l.b16 %v139
    %v429 = vunpack.c.l.b16 %v140
    %v430 = vunpack.c.l.b16 %v141
    %v431 = vunpack.c.l.b16 %v142
    %v432 = vunpack.c.l.b16 %v143
    %v433 = vunpack.c.l.b16 %v144
    %v434 = vunpack.c.l.b16 %v145
    %v435 = vunpack.c.l.b16 %v146
    %v436 = vunpack.c.l.b16 %v147
    %v437 = vunpack.c.l.b16 %v148
    %v438 = vunpack.c.l.b16 %v149
    %v439 = vunpack.c.l.b16 %v150
    %v440 = vunpack.c.l.b16 %v151
    %v441 = vunpack.c.l.b16 %v152
    %v442 = vunpack.c.l.b16 %v153
    %v443 = vunpack.c.l.b16 %v154
    %v444 = vunpack.c.l.b16 %v155
    %v445 = vunpack.c.l.b16 %v156
    %v446 = vunpack.c.l.b16 %v157
    %v447 = vunpack.c.l.b16 %v158
    %v448 = vunpack.c.l.b16 %v159
    %v449 = vunpack.c.l.b16 %v160
    %v450 = vunpack.c.l.b16 %v161
    %v451 = vunpack.c.l.b16 %v162
    %v452 = vunpack.c.l.b16 %v163
    %v453 = vunpack.c.l.b16 %v164
    %v454 = vunpack.c.l.b16 %v165
    %v455 = vunpack.c.l.b16 %v166
    %v456 = vunpack.c.l.b16 %v167
    %v457 = vunpack.c.l.b16 %v168
    %v458 = vunpack.c.l.b16 %v169
    %v459 = vpack.c.b16 %v332, %v331
    %v460 = vpack.c.b16 %v334, %v333
    %v461 = vpack.c.b16 %v336, %v335
    %v462 = vpack.c.b16 %v338, %v337
    %v463 = vpack.c.b16 %v340, %v339
    %v464 = vpack.c.b16 %v342, %v341
    %v465 = vpack.c.b16 %v344, %v343
    %v466 = vpack.c.b16 %v346, %v345
    %v467 = vpack.c.b16 %v348, %v347
    %v468 = vpack.c.b16 %v350, %v349
    %v469 = vpack.c.b16 %v352, %v351
    %v470 = vpack.c.b16 %v354, %v353
    %v471 = vpack.c.b16 %v356, %v355
    %v472 = vpack.c.b16 %v358, %v357
    %v473 = vpack.c.b16 %v360, %v359
    %v474 = vpack.c.b16 %v362, %v361
    %v475 = vpack.c.b16 %v364, %v363
    %v476 = vpack.c.b16 %v366, %v365
    %v477 = vpack.c.b16 %v368, %v367
    %v478 = vpack.c.b16 %v370, %v369
    %v479 = vpack.c.b16 %v372, %v371
    %v480 = vpack.c.b16 %v374, %v373
    %v481 = vpack.c.b16 %v376, %v375
    %v482 = vpack.c.b16 %v378, %v377
    %v483 = vpack.c.b16 %v380, %v379
    %v484 = vpack.c.b16 %v382, %v381
    %v485 = vpack.c.b16 %v384, %v383
    %v486 = vpack.c.b16 %v386, %v385
    %v487 = vpack.c.b16 %v388, %v387
    %v488 = vpack.c.b16 %v390, %v389
    %v489 = vpack.c.b16 %v392, %v391
    %v490 = vpack.c.b16 %v394, %v393
    %v491 = vpack.c.b16 %v396, %v395
    %v492 = vpack.c.b16 %v398, %v397
    %v493 = vpack.c.b16 %v400, %v399
    %v494 = vpack.c.b16 %v402, %v401
    %v495 = vpack.c.b16 %v404, %v403
    %v496 = vpack.c.b16 %v406, %v405
    %v497 = vpack.c.b16 %v408, %v407
    %v498 = vpack.c.b16 %v410, %v409
    %v499 = vpack.c.b16 %v412, %v411
    %v500 = vpack.c.b16 %v414, %v413
    %v501 = vpack.c.b16 %v416, %v415
    %v502 = vpack.c.b16 %v418, %v417
    %v503 = vpack.c.b16 %v420, %v419
    %v504 = vpack.c.b16 %v422, %v421
    %v505 = vpack.c.b16 %v424, %v423
    %v506 = vpack.c.b16 %v426, %v425
    %v507 = vpack.c.b16 %v428, %v427
    %v508 = vpack.c.b16 %v430, %v429
    %v509 = vpack.c.b16 %v432, %v431
    %v510 = vpack.c.b16 %v434, %v433
    %v511 = vpack.c.b16 %v436, %v435
    %v512 = vpack.c.b16 %v438, %v437
    %v513 = vpack.c.b16 %v440, %v439
    %v514 = vpack.c.b16 %v442, %v441
    %v515 = vpack.c.b16 %v444, %v443
    %v516 = vpack.c.b16 %v446, %v445
    %v517 = vpack.c.b16 %v448, %v447
    %v518 = vpack.c.b16 %v450, %v449
    %v519 = vpack.c.b16 %v452, %v451
    %v520 = vpack.c.b16 %v454, %v453
    %v521 = vpack.c.b16 %v456, %v455
    %v522 = vpack.c.b16 %v458, %v457
    %587 = vmatprep.subr.bf16.mxu0 0
    %588 = vmatpush1.bf16.msra.mxu0 %v459
    %589 = vmatprep.subr.bf16.mxu0 0
    %590 = vmatpush1.bf16.msra.mxu0 %v460
    %591 = vmatprep.subr.bf16.mxu0 0
    %592 = vmatpush1.bf16.msra.mxu0 %v461
    %593 = vmatprep.subr.bf16.mxu0 0
    %594 = vmatpush1.bf16.msra.mxu0 %v462
    %595 = vmatprep.subr.bf16.mxu0 0
    %596 = vmatpush1.bf16.msra.mxu0 %v463
    %597 = vmatprep.subr.bf16.mxu0 0
    %598 = vmatpush1.bf16.msra.mxu0 %v464
    %599 = vmatprep.subr.bf16.mxu0 0
    %600 = vmatpush1.bf16.msra.mxu0 %v465
    %601 = vmatprep.subr.bf16.mxu0 0
    %602 = vmatpush1.bf16.msra.mxu0 %v466
    %603 = vmatprep.subr.bf16.mxu0 0
    %604 = vmatpush1.bf16.msra.mxu0 %v467
    %605 = vmatprep.subr.bf16.mxu0 0
    %606 = vmatpush1.bf16.msra.mxu0 %v468
    %607 = vmatprep.subr.bf16.mxu0 0
    %608 = vmatpush1.bf16.msra.mxu0 %v469
    %609 = vmatprep.subr.bf16.mxu0 0
    %610 = vmatpush1.bf16.msra.mxu0 %v470
    %611 = vmatprep.subr.bf16.mxu0 0
    %612 = vmatpush1.bf16.msra.mxu0 %v471
    %613 = vmatprep.subr.bf16.mxu0 0
    %614 = vmatpush1.bf16.msra.mxu0 %v472
    %615 = vmatprep.subr.bf16.mxu0 0
    %616 = vmatpush1.bf16.msra.mxu0 %v473
    %617 = vmatprep.subr.bf16.mxu0 0
    %618 = vmatpush1.bf16.msra.mxu0 %v474
    %619 = vmatprep.mubr.bf16.mxu0 %v188
    %620 = vmatmul.mubr.bf16.gmra.mrb[0].mxu0 %v187
    %v621 = vpop.f32.mrb[0].mxu0
    %v622 = vadd.f32 %v174, %v621
    %v623 = vpop.f32.mrb[0].mxu0
    %v624 = vpop.f32.mrb[0].mxu0
    %v625 = vpop.f32.mrb[0].mxu0
    %626 = vdwg.mxu0
    %627 = vmatprep.subr.bf16.mxu0 0
    %628 = vmatpush1.bf16.msra.mxu0 %v475
    %629 = vmatprep.subr.bf16.mxu0 0
    %630 = vmatpush1.bf16.msra.mxu0 %v476
    %631 = vmatprep.subr.bf16.mxu0 0
    %632 = vmatpush1.bf16.msra.mxu0 %v477
    %633 = vmatprep.subr.bf16.mxu0 0
    %634 = vmatpush1.bf16.msra.mxu0 %v478
    %635 = vmatprep.subr.bf16.mxu0 0
    %636 = vmatpush1.bf16.msra.mxu0 %v479
    %637 = vmatprep.subr.bf16.mxu0 0
    %638 = vmatpush1.bf16.msra.mxu0 %v480
    %639 = vmatprep.subr.bf16.mxu0 0
    %640 = vmatpush1.bf16.msra.mxu0 %v481
    %641 = vmatprep.subr.bf16.mxu0 0
    %642 = vmatpush1.bf16.msra.mxu0 %v482
    %643 = vmatprep.subr.bf16.mxu0 0
    %644 = vmatpush1.bf16.msra.mxu0 %v483
    %645 = vmatprep.subr.bf16.mxu0 0
    %646 = vmatpush1.bf16.msra.mxu0 %v484
    %647 = vmatprep.subr.bf16.mxu0 0
    %648 = vmatpush1.bf16.msra.mxu0 %v485
    %649 = vmatprep.subr.bf16.mxu0 0
    %650 = vmatpush1.bf16.msra.mxu0 %v486
    %651 = vmatprep.subr.bf16.mxu0 0
    %652 = vmatpush1.bf16.msra.mxu0 %v487
    %653 = vmatprep.subr.bf16.mxu0 0
    %654 = vmatpush1.bf16.msra.mxu0 %v488
    %655 = vmatprep.subr.bf16.mxu0 0
    %656 = vmatpush1.bf16.msra.mxu0 %v489
    %657 = vmatprep.subr.bf16.mxu0 0
    %658 = vmatpush1.bf16.msra.mxu0 %v490
    %659 = vmatprep.mubr.bf16.mxu0 %v190
    %660 = vmatmul.mubr.bf16.gmra.mrb[0].mxu0 %v189
    %v661 = vpop.f32.mrb[0].mxu0
    %v662 = vadd.f32 %v622, %v661
    %v663 = vpop.f32.mrb[0].mxu0
    %v664 = vpop.f32.mrb[0].mxu0
    %v665 = vpop.f32.mrb[0].mxu0
    %666 = vdwg.mxu0
    %667 = vmatprep.subr.bf16.mxu0 0
    %668 = vmatpush1.bf16.msra.mxu0 %v491
    %669 = vmatprep.subr.bf16.mxu0 0
    %670 = vmatpush1.bf16.msra.mxu0 %v492
    %671 = vmatprep.subr.bf16.mxu0 0
    %672 = vmatpush1.bf16.msra.mxu0 %v493
    %673 = vmatprep.subr.bf16.mxu0 0
    %674 = vmatpush1.bf16.msra.mxu0 %v494
    %675 = vmatprep.subr.bf16.mxu0 0
    %676 = vmatpush1.bf16.msra.mxu0 %v495
    %677 = vmatprep.subr.bf16.mxu0 0
    %678 = vmatpush1.bf16.msra.mxu0 %v496
    %679 = vmatprep.subr.bf16.mxu0 0
    %680 = vmatpush1.bf16.msra.mxu0 %v497
    %681 = vmatprep.subr.bf16.mxu0 0
    %682 = vmatpush1.bf16.msra.mxu0 %v498
    %683 = vmatprep.subr.bf16.mxu0 0
    %684 = vmatpush1.bf16.msra.mxu0 %v499
    %685 = vmatprep.subr.bf16.mxu0 0
    %686 = vmatpush1.bf16.msra.mxu0 %v500
    %687 = vmatprep.subr.bf16.mxu0 0
    %688 = vmatpush1.bf16.msra.mxu0 %v501
    %689 = vmatprep.subr.bf16.mxu0 0
    %690 = vmatpush1.bf16.msra.mxu0 %v502
    %691 = vmatprep.subr.bf16.mxu0 0
    %692 = vmatpush1.bf16.msra.mxu0 %v503
    %693 = vmatprep.subr.bf16.mxu0 0
    %694 = vmatpush1.bf16.msra.mxu0 %v504
    %695 = vmatprep.subr.bf16.mxu0 0
    %696 = vmatpush1.bf16.msra.mxu0 %v505
    %697 = vmatprep.subr.bf16.mxu0 0
    %698 = vmatpush1.bf16.msra.mxu0 %v506
    %699 = vmatprep.mubr.bf16.mxu0 %v192
    %700 = vmatmul.mubr.bf16.gmra.mrb[0].mxu0 %v191
    %v701 = vpop.f32.mrb[0].mxu0
    %v702 = vadd.f32 %v662, %v701
    %v703 = vpop.f32.mrb[0].mxu0
    %v704 = vpop.f32.mrb[0].mxu0
    %v705 = vpop.f32.mrb[0].mxu0
    %706 = vdwg.mxu0
    %707 = vmatprep.subr.bf16.mxu0 0
    %708 = vmatpush1.bf16.msra.mxu0 %v507
    %709 = vmatprep.subr.bf16.mxu0 0
    %710 = vmatpush1.bf16.msra.mxu0 %v508
    %711 = vmatprep.subr.bf16.mxu0 0
    %712 = vmatpush1.bf16.msra.mxu0 %v509
    %713 = vmatprep.subr.bf16.mxu0 0
    %714 = vmatpush1.bf16.msra.mxu0 %v510
    %715 = vmatprep.subr.bf16.mxu0 0
    %716 = vmatpush1.bf16.msra.mxu0 %v511
    %717 = vmatprep.subr.bf16.mxu0 0
    %718 = vmatpush1.bf16.msra.mxu0 %v512
    %719 = vmatprep.subr.bf16.mxu0 0
    %720 = vmatpush1.bf16.msra.mxu0 %v513
    %721 = vmatprep.subr.bf16.mxu0 0
    %722 = vmatpush1.bf16.msra.mxu0 %v514
    %723 = vmatprep.subr.bf16.mxu0 0
    %724 = vmatpush1.bf16.msra.mxu0 %v515
    %725 = vmatprep.subr.bf16.mxu0 0
    %726 = vmatpush1.bf16.msra.mxu0 %v516
    %727 = vmatprep.subr.bf16.mxu0 0
    %728 = vmatpush1.bf16.msra.mxu0 %v517
    %729 = vmatprep.subr.bf16.mxu0 0
    %730 = vmatpush1.bf16.msra.mxu0 %v518
    %731 = vmatprep.subr.bf16.mxu0 0
    %732 = vmatpush1.bf16.msra.mxu0 %v519
    %733 = vmatprep.subr.bf16.mxu0 0
    %734 = vmatpush1.bf16.msra.mxu0 %v520
    %735 = vmatprep.subr.bf16.mxu0 0
    %736 = vmatpush1.bf16.msra.mxu0 %v521
    %737 = vmatprep.subr.bf16.mxu0 0
    %738 = vmatpush1.bf16.msra.mxu0 %v522
    %739 = vmatprep.mubr.bf16.mxu0 %v194
    %740 = vmatmul.mubr.bf16.gmra.mrb[0].mxu0 %v193
    %v741 = vpop.f32.mrb[0].mxu0
    %v742 = vadd.f32 %v702, %v741
    %v743 = vpop.f32.mrb[0].mxu0
    %v744 = vpop.f32.mrb[0].mxu0
    %v745 = vpop.f32.mrb[0].mxu0
    %746 = vdwg.mxu0
    %v747 = vmax.f32 %v742, 0.0
    %v748 = vld [vmem:[%s5 + $0x1] sm:$0x1]
    %v749 = vld [vmem:[%s5 + $0x2] sm:$0x1]
    %750 = vadd.xlane.f32.xlu0 %v747
    %v751 = vpop.xlane.xlu0 %750
    %v752 = vmul.f32 %v751, 0.03125
    %v753 = vmul.f32 %v747, %v747
    %754 = vadd.xlane.f32.xlu0 %v753
    %v755 = vpop.xlane.xlu0 %754
    %v756 = vmul.f32 %v755, 0.03125
    %v757 = vmul.f32 %v752, %v752
    %v758 = vsub.f32 %v756, %v757
    %v759 = vadd.f32 %v758, 1e-05
    %v760 = vrsqrt.pop %v759
    %v761 = vlaneseq
    %v762 = vshrl.u32 %v761, 7
    %v763 = vsub.s32 0, %v762
    %v764 = vrot.slane %v748, %v763
    %v765 = vmul.f32 %v764, %v760
    %v766 = vmul.f32 %v752, %v765
    %v767 = vlaneseq
    %v768 = vshrl.u32 %v767, 7
    %v769 = vsub.s32 0, %v768
    %v770 = vrot.slane %v749, %v769
    %v771 = vsub.f32 %v770, %v766
    %v772 = vmul.f32 %v747, %v765
    %v773 = vadd.f32 %v772, %v771
    %v774 = vpack.c.bf16 %v773, %v773
    %v775 = vld [vmem:[%s2] sm:$0xf]
    %v776 = vld [vmem:[%s2 + $0x4] sm:$0xf]
    %v777 = vld [vmem:[%s2 + $0x8] sm:$0xf]
    %v778 = vld [vmem:[%s2 + $0xc] sm:$0xf]
    %v779 = vld [vmem:[%s2 + $0x10] sm:$0xf]
    %v780 = vld [vmem:[%s2 + $0x14] sm:$0xf]
    %v781 = vld [vmem:[%s2 + $0x18] sm:$0xf]
    %v782 = vld [vmem:[%s2 + $0x1c] sm:$0xf]
    %v783 = vld [vmem:[%s2 + $0x20] sm:$0xf]
    %v784 = vld [vmem:[%s2 + $0x24] sm:$0xf]
    %v785 = vld [vmem:[%s2 + $0x28] sm:$0xf]
    %v786 = vld [vmem:[%s2 + $0x2c] sm:$0xf]
    %v787 = vld [vmem:[%s2 + $0x30] sm:$0xf]
    %v788 = vld [vmem:[%s2 + $0x34] sm:$0xf]
    %v789 = vld [vmem:[%s2 + $0x38] sm:$0xf]
    %v790 = vld [vmem:[%s2 + $0x3c] sm:$0xf]
    %v791 = vld [vmem:[%s5 + $0x3] sm:$0x1]
    %v792 = vlaneseq
    %v793 = vshrl.u32 %v792, 7
    %v794 = vsub.s32 0, %v793
    %v795 = vrot.slane %v791, %v794
    %v812 = vunpack.c.l.b16 %v775
    %v813 = vunpack.c.l.b16 %v776
    %v814 = vunpack.c.l.b16 %v777
    %v815 = vunpack.c.l.b16 %v778
    %v816 = vunpack.c.l.b16 %v779
    %v817 = vunpack.c.l.b16 %v780
    %v818 = vunpack.c.l.b16 %v781
    %v819 = vunpack.c.l.b16 %v782
    %v820 = vunpack.c.l.b16 %v783
    %v821 = vunpack.c.l.b16 %v784
    %v822 = vunpack.c.l.b16 %v785
    %v823 = vunpack.c.l.b16 %v786
    %v824 = vunpack.c.l.b16 %v787
    %v825 = vunpack.c.l.b16 %v788
    %v826 = vunpack.c.l.b16 %v789
    %v827 = vunpack.c.l.b16 %v790
    %v828 = vpack.c.b16 %v813, %v812
    %v829 = vpack.c.b16 %v815, %v814
    %v830 = vpack.c.b16 %v817, %v816
    %v831 = vpack.c.b16 %v819, %v818
    %v832 = vpack.c.b16 %v821, %v820
    %v833 = vpack.c.b16 %v823, %v822
    %v834 = vpack.c.b16 %v825, %v824
    %v835 = vpack.c.b16 %v827, %v826
    %844 = vmatprep.subr.bf16.mxu0 0
    %845 = vmatpush1.bf16.msra.mxu0 %v828
    %846 = vmatprep.subr.bf16.mxu0 0
    %847 = vmatpush1.bf16.msra.mxu0 %v829
    %848 = vmatprep.subr.bf16.mxu0 0
    %849 = vmatpush1.bf16.msra.mxu0 %v830
    %850 = vmatprep.subr.bf16.mxu0 0
    %851 = vmatpush1.bf16.msra.mxu0 %v831
    %852 = vmatprep.subr.bf16.mxu0 0
    %853 = vmatpush1.bf16.msra.mxu0 %v832
    %854 = vmatprep.subr.bf16.mxu0 0
    %855 = vmatpush1.bf16.msra.mxu0 %v833
    %856 = vmatprep.subr.bf16.mxu0 0
    %857 = vmatpush1.bf16.msra.mxu0 %v834
    %858 = vmatprep.subr.bf16.mxu0 0
    %859 = vmatpush1.bf16.msra.mxu0 %v835
    %860 = vmatprep.subr.bf16.mxu0 0
    %861 = vmatpush1.bf16.msra.mxu0 0
    %862 = vmatprep.subr.bf16.mxu0 0
    %863 = vmatpush1.bf16.msra.mxu0 0
    %864 = vmatprep.subr.bf16.mxu0 0
    %865 = vmatpush1.bf16.msra.mxu0 0
    %866 = vmatprep.subr.bf16.mxu0 0
    %867 = vmatpush1.bf16.msra.mxu0 0
    %868 = vmatprep.subr.bf16.mxu0 0
    %869 = vmatpush1.bf16.msra.mxu0 0
    %870 = vmatprep.subr.bf16.mxu0 0
    %871 = vmatpush1.bf16.msra.mxu0 0
    %872 = vmatprep.subr.bf16.mxu0 0
    %873 = vmatpush1.bf16.msra.mxu0 0
    %874 = vmatprep.subr.bf16.mxu0 0
    %875 = vmatpush1.bf16.msra.mxu0 0
    %876 = vmatprep.mubr.bf16.mxu0 0
    %877 = vmatmul.mubr.bf16.gmra.mrb[0].mxu0 %v774
    %v878 = vpop.f32.mrb[0].mxu0
    %v879 = vadd.f32 %v795, %v878
    %v880 = vpop.f32.mrb[0].mxu0
    %v881 = vpop.f32.mrb[0].mxu0
    %v882 = vpop.f32.mrb[0].mxu0
    %883 = vdwg.mxu0
    %v884 = vmax.f32 %v879, 0.0
    %v885 = vld [vmem:[%s5 + $0x4] sm:$0x1]
    %v886 = vld [vmem:[%s5 + $0x5] sm:$0x1]
    %887 = vadd.xlane.f32.xlu0 %v884
    %v888 = vpop.xlane.xlu0 %887
    %v889 = vmul.f32 %v888, 0.015625
    %v890 = vmul.f32 %v884, %v884
    %891 = vadd.xlane.f32.xlu0 %v890
    %v892 = vpop.xlane.xlu0 %891
    %v893 = vmul.f32 %v892, 0.015625
    %v894 = vmul.f32 %v889, %v889
    %v895 = vsub.f32 %v893, %v894
    %v896 = vadd.f32 %v895, 1e-05
    %v897 = vrsqrt.pop %v896
    %v898 = vlaneseq
    %v899 = vshrl.u32 %v898, 7
    %v900 = vsub.s32 0, %v899
    %v901 = vrot.slane %v885, %v900
    %v902 = vmul.f32 %v901, %v897
    %v903 = vmul.f32 %v889, %v902
    %v904 = vlaneseq
    %v905 = vshrl.u32 %v904, 7
    %v906 = vsub.s32 0, %v905
    %v907 = vrot.slane %v886, %v906
    %v908 = vsub.f32 %v907, %v903
    %v909 = vmul.f32 %v884, %v902
    %v910 = vadd.f32 %v909, %v908
    %v911 = vpack.c.bf16 %v910, %v910
    %v912 = vld [vmem:[%s3] sm:$0xf]
    %v913 = vld [vmem:[%s3 + $0x4] sm:$0xf]
    %v914 = vld [vmem:[%s3 + $0x8] sm:$0xf]
    %v915 = vld [vmem:[%s3 + $0xc] sm:$0xf]
    %v916 = vld [vmem:[%s3 + $0x10] sm:$0xf]
    %v917 = vld [vmem:[%s3 + $0x14] sm:$0xf]
    %v918 = vld [vmem:[%s3 + $0x18] sm:$0xf]
    %v919 = vld [vmem:[%s3 + $0x1c] sm:$0xf]
    %v920 = vld [vmem:[%s3 + $0x20] sm:$0xf]
    %v921 = vld [vmem:[%s3 + $0x24] sm:$0xf]
    %v922 = vld [vmem:[%s3 + $0x28] sm:$0xf]
    %v923 = vld [vmem:[%s3 + $0x2c] sm:$0xf]
    %v924 = vld [vmem:[%s3 + $0x30] sm:$0xf]
    %v925 = vld [vmem:[%s3 + $0x34] sm:$0xf]
    %v926 = vld [vmem:[%s3 + $0x38] sm:$0xf]
    %v927 = vld [vmem:[%s3 + $0x3c] sm:$0xf]
    %v928 = vld [vmem:[%s5 + $0x6] sm:$0x1]
    %v929 = vlaneseq
    %v930 = vshrl.u32 %v929, 7
    %v931 = vsub.s32 0, %v930
    %v932 = vrot.slane %v928, %v931
    %v949 = vunpack.c.l.b16 %v912
    %v950 = vunpack.c.l.b16 %v913
    %v951 = vunpack.c.l.b16 %v914
    %v952 = vunpack.c.l.b16 %v915
    %v953 = vunpack.c.l.b16 %v916
    %v954 = vunpack.c.l.b16 %v917
    %v955 = vunpack.c.l.b16 %v918
    %v956 = vunpack.c.l.b16 %v919
    %v957 = vunpack.c.l.b16 %v920
    %v958 = vunpack.c.l.b16 %v921
    %v959 = vunpack.c.l.b16 %v922
    %v960 = vunpack.c.l.b16 %v923
    %v961 = vunpack.c.l.b16 %v924
    %v962 = vunpack.c.l.b16 %v925
    %v963 = vunpack.c.l.b16 %v926
    %v964 = vunpack.c.l.b16 %v927
    %v965 = vpack.c.b16 %v950, %v949
    %v966 = vpack.c.b16 %v952, %v951
    %v967 = vpack.c.b16 %v954, %v953
    %v968 = vpack.c.b16 %v956, %v955
    %v969 = vpack.c.b16 %v958, %v957
    %v970 = vpack.c.b16 %v960, %v959
    %v971 = vpack.c.b16 %v962, %v961
    %v972 = vpack.c.b16 %v964, %v963
    %981 = vmatprep.subr.bf16.mxu0 0
    %982 = vmatpush1.bf16.msra.mxu0 %v965
    %983 = vmatprep.subr.bf16.mxu0 0
    %984 = vmatpush1.bf16.msra.mxu0 %v966
    %985 = vmatprep.subr.bf16.mxu0 0
    %986 = vmatpush1.bf16.msra.mxu0 %v967
    %987 = vmatprep.subr.bf16.mxu0 0
    %988 = vmatpush1.bf16.msra.mxu0 %v968
    %989 = vmatprep.subr.bf16.mxu0 0
    %990 = vmatpush1.bf16.msra.mxu0 %v969
    %991 = vmatprep.subr.bf16.mxu0 0
    %992 = vmatpush1.bf16.msra.mxu0 %v970
    %993 = vmatprep.subr.bf16.mxu0 0
    %994 = vmatpush1.bf16.msra.mxu0 %v971
    %995 = vmatprep.subr.bf16.mxu0 0
    %996 = vmatpush1.bf16.msra.mxu0 %v972
    %997 = vmatprep.subr.bf16.mxu0 0
    %998 = vmatpush1.bf16.msra.mxu0 0
    %999 = vmatprep.subr.bf16.mxu0 0
    %1000 = vmatpush1.bf16.msra.mxu0 0
    %1001 = vmatprep.subr.bf16.mxu0 0
    %1002 = vmatpush1.bf16.msra.mxu0 0
    %1003 = vmatprep.subr.bf16.mxu0 0
    %1004 = vmatpush1.bf16.msra.mxu0 0
    %1005 = vmatprep.subr.bf16.mxu0 0
    %1006 = vmatpush1.bf16.msra.mxu0 0
    %1007 = vmatprep.subr.bf16.mxu0 0
    %1008 = vmatpush1.bf16.msra.mxu0 0
    %1009 = vmatprep.subr.bf16.mxu0 0
    %1010 = vmatpush1.bf16.msra.mxu0 0
    %1011 = vmatprep.subr.bf16.mxu0 0
    %1012 = vmatpush1.bf16.msra.mxu0 0
    %1013 = vmatprep.mubr.bf16.mxu0 0
    %1014 = vmatmul.mubr.bf16.gmra.mrb[0].mxu0 %v911
    %v1015 = vpop.f32.mrb[0].mxu0
    %v1016 = vadd.f32 %v932, %v1015
    %v1017 = vpop.f32.mrb[0].mxu0
    %v1018 = vpop.f32.mrb[0].mxu0
    %v1019 = vpop.f32.mrb[0].mxu0
    %1020 = vdwg.mxu0
    %v1021 = vmax.f32 %v1016, 0.0
    %v1022 = vld [vmem:[%s5 + $0x7] sm:$0x1]
    %v1023 = vld [vmem:[%s5 + $0x8] sm:$0x1]
    %1024 = vadd.xlane.f32.xlu0 %v1021
    %v1025 = vpop.xlane.xlu0 %1024
    %v1026 = vmul.f32 %v1025, 0.03125
    %v1027 = vmul.f32 %v1021, %v1021
    %1028 = vadd.xlane.f32.xlu0 %v1027
    %v1029 = vpop.xlane.xlu0 %1028
    %v1030 = vmul.f32 %v1029, 0.03125
    %v1031 = vmul.f32 %v1026, %v1026
    %v1032 = vsub.f32 %v1030, %v1031
    %v1033 = vadd.f32 %v1032, 1e-05
    %v1034 = vrsqrt.pop %v1033
    %v1035 = vlaneseq
    %v1036 = vshrl.u32 %v1035, 7
    %v1037 = vsub.s32 0, %v1036
    %v1038 = vrot.slane %v1022, %v1037
    %v1039 = vmul.f32 %v1038, %v1034
    %v1040 = vmul.f32 %v1026, %v1039
    %v1041 = vlaneseq
    %v1042 = vshrl.u32 %v1041, 7
    %v1043 = vsub.s32 0, %v1042
    %v1044 = vrot.slane %v1023, %v1043
    %v1045 = vsub.f32 %v1044, %v1040
    %v1046 = vmul.f32 %v1021, %v1039
    %v1047 = vadd.f32 %v1046, %v1045
    %v1048 = vpack.c.bf16 %v1047, %v1047
    %v1049 = vld [vmem:[%s4] sm:$0xf]
    %v1050 = vld [vmem:[%s4 + $0x4] sm:$0xf]
    %v1051 = vld [vmem:[%s4 + $0x8] sm:$0xf]
    %v1052 = vld [vmem:[%s4 + $0xc] sm:$0xf]
    %v1053 = vld [vmem:[%s4 + $0x10] sm:$0xf]
    %v1054 = vld [vmem:[%s4 + $0x14] sm:$0xf]
    %v1055 = vld [vmem:[%s4 + $0x18] sm:$0xf]
    %v1056 = vld [vmem:[%s4 + $0x1c] sm:$0xf]
    %v1057 = vld [vmem:[%s4 + $0x20] sm:$0xf]
    %v1058 = vld [vmem:[%s4 + $0x24] sm:$0xf]
    %v1059 = vld [vmem:[%s4 + $0x28] sm:$0xf]
    %v1060 = vld [vmem:[%s4 + $0x2c] sm:$0xf]
    %v1061 = vld [vmem:[%s4 + $0x30] sm:$0xf]
    %v1062 = vld [vmem:[%s4 + $0x34] sm:$0xf]
    %v1063 = vld [vmem:[%s4 + $0x38] sm:$0xf]
    %v1064 = vld [vmem:[%s4 + $0x3c] sm:$0xf]
    %v1065 = vld [vmem:[%s5 + $0x9] sm:$0x1]
    %v1066 = vlaneseq
    %v1067 = vshrl.u32 %v1066, 7
    %v1068 = vsub.s32 0, %v1067
    %v1069 = vrot.slane %v1065, %v1068
    %v1086 = vunpack.c.l.b16 %v1049
    %v1087 = vunpack.c.l.b16 %v1050
    %v1088 = vunpack.c.l.b16 %v1051
    %v1089 = vunpack.c.l.b16 %v1052
    %v1090 = vunpack.c.l.b16 %v1053
    %v1091 = vunpack.c.l.b16 %v1054
    %v1092 = vunpack.c.l.b16 %v1055
    %v1093 = vunpack.c.l.b16 %v1056
    %v1094 = vunpack.c.l.b16 %v1057
    %v1095 = vunpack.c.l.b16 %v1058
    %v1096 = vunpack.c.l.b16 %v1059
    %v1097 = vunpack.c.l.b16 %v1060
    %v1098 = vunpack.c.l.b16 %v1061
    %v1099 = vunpack.c.l.b16 %v1062
    %v1100 = vunpack.c.l.b16 %v1063
    %v1101 = vunpack.c.l.b16 %v1064
    %v1102 = vpack.c.b16 %v1087, %v1086
    %v1103 = vpack.c.b16 %v1089, %v1088
    %v1104 = vpack.c.b16 %v1091, %v1090
    %v1105 = vpack.c.b16 %v1093, %v1092
    %v1106 = vpack.c.b16 %v1095, %v1094
    %v1107 = vpack.c.b16 %v1097, %v1096
    %v1108 = vpack.c.b16 %v1099, %v1098
    %v1109 = vpack.c.b16 %v1101, %v1100
    %1118 = vmatprep.subr.bf16.mxu0 0
    %1119 = vmatpush1.bf16.msra.mxu0 %v1102
    %1120 = vmatprep.subr.bf16.mxu0 0
    %1121 = vmatpush1.bf16.msra.mxu0 %v1103
    %1122 = vmatprep.subr.bf16.mxu0 0
    %1123 = vmatpush1.bf16.msra.mxu0 %v1104
    %1124 = vmatprep.subr.bf16.mxu0 0
    %1125 = vmatpush1.bf16.msra.mxu0 %v1105
    %1126 = vmatprep.subr.bf16.mxu0 0
    %1127 = vmatpush1.bf16.msra.mxu0 %v1106
    %1128 = vmatprep.subr.bf16.mxu0 0
    %1129 = vmatpush1.bf16.msra.mxu0 %v1107
    %1130 = vmatprep.subr.bf16.mxu0 0
    %1131 = vmatpush1.bf16.msra.mxu0 %v1108
    %1132 = vmatprep.subr.bf16.mxu0 0
    %1133 = vmatpush1.bf16.msra.mxu0 %v1109
    %1134 = vmatprep.subr.bf16.mxu0 0
    %1135 = vmatpush1.bf16.msra.mxu0 0
    %1136 = vmatprep.subr.bf16.mxu0 0
    %1137 = vmatpush1.bf16.msra.mxu0 0
    %1138 = vmatprep.subr.bf16.mxu0 0
    %1139 = vmatpush1.bf16.msra.mxu0 0
    %1140 = vmatprep.subr.bf16.mxu0 0
    %1141 = vmatpush1.bf16.msra.mxu0 0
    %1142 = vmatprep.subr.bf16.mxu0 0
    %1143 = vmatpush1.bf16.msra.mxu0 0
    %1144 = vmatprep.subr.bf16.mxu0 0
    %1145 = vmatpush1.bf16.msra.mxu0 0
    %1146 = vmatprep.subr.bf16.mxu0 0
    %1147 = vmatpush1.bf16.msra.mxu0 0
    %1148 = vmatprep.subr.bf16.mxu0 0
    %1149 = vmatpush1.bf16.msra.mxu0 0
    %1150 = vmatprep.mubr.bf16.mxu0 0
    %1151 = vmatmul.mubr.bf16.gmra.mrb[0].mxu0 %v1048
    %v1152 = vpop.f32.mrb[0].mxu0
    %v1153 = vadd.f32 %v1069, %v1152
    %v1154 = vpop.f32.mrb[0].mxu0
    %v1155 = vpop.f32.mrb[0].mxu0
    %v1156 = vpop.f32.mrb[0].mxu0
    %1157 = vdwg.mxu0
    %1158 = vst [vmem:[%s6] sm:$0xff] %v1153
    // Predicated region
    $region30: #{expert_forward.1} parent=1 // pred_check
      _
    $region31: #{expert_forward.1} parent=1 // pred_check_branch
      %1160 = sbr.rel (0) target = $region33
    $region32: #{expert_forward.1} parent=1 // pred_region
      _
    $region33: #{expert_forward.1} parent=1 // pred_fallthru
      _
    // Predicated region
    $region34: #{expert_forward.1} parent=1 // pred_check
      _
    $region35: #{expert_forward.1} parent=1 // pred_check_branch
      %1162 = sbr.rel (0) target = $region37
    $region36: #{expert_forward.1} parent=1 // pred_region
      _
    $region37: #{expert_forward.1} parent=1 // pred_fallthru
      _
    %1163 = vsyncpa [#allocation3], 1

</llo_original>
